<compile_context>
chip_gen: v7x
topology: tpu7x:2x2x1
jax: 0.10.0
libtpu: 0.0.40
codegen_flags: <defaults>
</compile_context>

<pallas_src>
import functools

import jax
import jax.numpy as jnp
from jax import lax
from jax.experimental import pallas as pl
from jax.experimental.pallas import tpu as pltpu


def _conv1d_same_kernel(x_ref, w_ref, b_ref, o_ref, *scratch, chunk, lane_aligned):
    """One grid step: TN samples, channels-first.

    x_ref : (TN, C_in,  T)        VMEM input block
    w_ref : (K, C_in, C_out, 1)   VMEM, tiny, constant across the grid
    b_ref : (C_out, 1)            VMEM, tiny, constant across the grid
    o_ref : (TN, C_out, T)        VMEM output block (minor dim = T -> unmasked,
                                  lane-dense stores when T % 128 == 0)
    scratch: optionally one (TN, C_in, T+K-1) VMEM halo buffer, allocated only for the
             non-lane-aligned-T fallback path.
    """
    tn, c_in, t = x_ref.shape
    k_size = w_ref.shape[0]
    c_out = w_ref.shape[2]
    pad_left = (k_size - 1) // 2
    pad_right = (k_size - 1) - pad_left
    n_chunks = tn // chunk                      # exact: tn is a multiple of chunk

    bias_col = b_ref[...].astype(jnp.float32)   # (C_out, 1)

    if not lane_aligned:
        # Fallback for T not a multiple of 128 (e.g. the demo T=16): build the
        # zero-halo'd copy once per block and take static windows from it.  At these
        # sizes the kernel is lane-starved regardless; the real fix is padding T
        # upstream to a 128 multiple.
        halo_ref = scratch[0]
        if pad_left:
            halo_ref[:, :, 0:pad_left] = jnp.zeros((tn, c_in, pad_left), x_ref.dtype)
        if pad_right:
            halo_ref[:, :, pad_left + t:] = jnp.zeros((tn, c_in, pad_right), x_ref.dtype)
        halo_ref[:, :, pad_left:pad_left + t] = x_ref[...]

    def compute_chunk(start):
        # Accumulator initialized with the bias; the chunk is sized so the whole
        # K*C_in tap chain stays in vregs and each output vreg is stored exactly once.
        acc = jnp.broadcast_to(bias_col, (chunk, c_out, t))
        if lane_aligned:
            xc = x_ref[pl.ds(start, chunk), :, :].astype(jnp.float32)  # (chunk,C_in,T)
            for kk in range(k_size):
                # 'same' padding without a halo copy: circular lane roll (XLU, hidden
                # under the VALU tap work) + a static edge mask.
                shift = (pad_left - kk) % t
                xs = pltpu.roll(xc, shift=shift, axis=2) if shift else xc
                lo, hi = pad_left - kk, t + pad_left - kk
                if lo > 0 or hi < t:
                    col = lax.broadcasted_iota(jnp.int32, (chunk, c_in, t), 2)
                    xs = jnp.where((col >= lo) & (col < hi), xs, 0.0)
                for ci in range(c_in):
                    w_col = w_ref[kk, ci].astype(jnp.float32)          # (C_out, 1)
                    acc = acc + xs[:, ci:ci + 1, :] * w_col            # (chunk,C_out,T)
        else:
            for kk in range(k_size):
                for ci in range(c_in):
                    w_col = w_ref[kk, ci].astype(jnp.float32)
                    win = halo_ref[pl.ds(start, chunk), ci:ci + 1, kk:kk + t]
                    acc = acc + win.astype(jnp.float32) * w_col
        o_ref[pl.ds(start, chunk), :, :] = acc.astype(o_ref.dtype)

    if n_chunks == 1:
        compute_chunk(0)
    else:
        def body(i, carry):
            compute_chunk(pl.multiple_of(i * chunk, chunk))
            return carry
        lax.fori_loop(0, n_chunks, body, 0)


def _tpu_generation_config():
    """Returns (vmem_cap_bytes, per_block_hbm_traffic_target_bytes, multi_core)."""
    vmem_bytes = 128 << 20
    try:
        info = pltpu.get_tpu_info()
        vmem_bytes = int(getattr(info, "vmem_capacity_bytes", vmem_bytes))
    except Exception:  # no TPU visible / field renamed -> conservative defaults
        pass
    if vmem_bytes <= (64 << 20):
        # v7x-like: 64 MiB VMEM, ~3.2 TB/s HBM, 2 TensorCores per chip.
        return 48 << 20, 8 << 20, True
    # v5e / v6e: 128 MiB VMEM, single TensorCore.
    return 96 << 20, 16 << 20, False


def _pick_block_params(n, c_in, c_out, t, k, samples_per_block=None):
    """Returns (tn, chunk, lane_aligned, vmem_limit_bytes)."""
    vmem_cap, traffic_target, multi_core = _tpu_generation_config()
    itemsize = 4  # f32
    lane_aligned = (t % 128 == 0)

    # In-kernel sub-chunk (samples per inner iteration): sized so acc + x chunk +
    # per-tap temps (~(3*C_out + 2*C_in)*T*4 bytes per sample) fit in roughly half of
    # the 256 KiB vreg file -> the tap chain accumulates in registers.
    chunk = max(1, (128 * 1024) // max(itemsize * t * (3 * c_out + 2 * c_in), 1))
    chunk = min(chunk, n)

    per_sample_hbm = itemsize * t * (c_in + c_out)             # one read + one write
    per_sample_vmem = itemsize * t * (2 * c_in + 3 * c_out)    # 2x-buffered in/out + temp
    if not lane_aligned:
        per_sample_vmem += itemsize * c_in * (t + k - 1)       # fallback halo scratch
    fixed_vmem = 2 << 20                                       # weights/bias/chunk temps

    if samples_per_block is None:
        tn = max(1, traffic_target // max(per_sample_hbm, 1))
        tn = min(tn, max(1, (vmem_cap - fixed_vmem) // max(per_sample_vmem, 1)))
        if multi_core:
            # Megacore balance: aim for >= 8 grid blocks, but never shrink a block
            # below ~1 MiB of HBM traffic (single-TC chips skip this entirely).
            tn_eight = max(1, n // 8)
            if tn_eight * per_sample_hbm >= (1 << 20):
                tn = min(tn, tn_eight)
    else:
        tn = int(samples_per_block)

    tn = max(1, min(tn, n))
    chunk = min(chunk, tn)
    tn = max(chunk, (tn // chunk) * chunk)     # in-block chunking must tile exactly

    block_vmem = tn * per_sample_vmem + fixed_vmem
    vmem_limit = int(min(vmem_cap, max(32 << 20, block_vmem)))
    return tn, chunk, lane_aligned, vmem_limit


@functools.partial(jax.jit, static_argnames=("samples_per_block",))
def custom_conv1d(inputs, weight, bias, *, samples_per_block=None):
    """Pallas TPU forward of CustomConv1D.

    inputs: (B, S, C_in, T) float32
    weight: (C_out, C_in, K)  -- PyTorch nn.Conv1d layout (cross-correlation, no flip)
    bias:   (C_out,)
    returns (B, S, C_out, T) == Conv1d(padding='same', stride=1) applied per (B, S).
    """
    b_sz, s_sz, c_in, t = inputs.shape
    c_out, c_in_w, k = weight.shape
    assert c_in_w == c_in
    n = b_sz * s_sz

    # Free reshapes only: no wrapper-side pad / transpose (each would be a full extra
    # HBM pass); the kernel reads x once and writes out once.
    x = inputs.reshape(n, c_in, t)                       # (N, C_in, T)
    # Tiny weight re-arrangement so w_ref[k, ci] is already a (C_out, 1) column with
    # C_out on the sublane axis (broadcasts directly against (chunk, 1, T) windows).
    w4 = jnp.transpose(weight, (2, 1, 0))[..., None]     # (K, C_in, C_out, 1)
    b2 = bias.reshape(c_out, 1)                          # (C_out, 1)

    tn, chunk, lane_aligned, vmem_limit = _pick_block_params(
        n, c_in, c_out, t, k, samples_per_block)
    num_blocks = pl.cdiv(n, tn)

    scratch_shapes = []
    if not lane_aligned:
        scratch_shapes.append(pltpu.VMEM((tn, c_in, t + k - 1), inputs.dtype))

    kernel = functools.partial(
        _conv1d_same_kernel, chunk=chunk, lane_aligned=lane_aligned)

    out_nct = pl.pallas_call(
        kernel,
        out_shape=jax.ShapeDtypeStruct((n, c_out, t), inputs.dtype),
        grid_spec=pltpu.PrefetchScalarGridSpec(
            num_scalar_prefetch=0,
            grid=(num_blocks,),
            in_specs=[
                pl.BlockSpec((tn, c_in, t), lambda i: (i, 0, 0)),
                # Weight / bias: whole (tiny) arrays, constant index -> fetched once.
                pl.BlockSpec((k, c_in, c_out, 1), lambda i: (0, 0, 0, 0)),
                pl.BlockSpec((c_out, 1), lambda i: (0, 0)),
            ],
            out_specs=pl.BlockSpec((tn, c_out, t), lambda i: (i, 0, 0)),
            scratch_shapes=tuple(scratch_shapes),
        ),
        compiler_params=pltpu.CompilerParams(
            dimension_semantics=("parallel",),
            vmem_limit_bytes=vmem_limit,
        ),
    )(x, w4, b2)

    return out_nct.reshape(b_sz, s_sz, c_out, t)          # free reshape back


def _reference_conv1d(inputs, weight, bias):
    """Pure-JAX reference with PyTorch Conv1d(padding='same', stride=1) semantics."""
    b_sz, s_sz, c_in, t = inputs.shape
    c_out, _, k = weight.shape
    x = inputs.reshape(b_sz * s_sz, c_in, t)
    pad_left = (k - 1) // 2
    xp = jnp.pad(x, ((0, 0), (0, 0), (pad_left, (k - 1) - pad_left)))
    out = jnp.zeros((b_sz * s_sz, c_out, t), jnp.float32)
    for kk in range(k):
        out = out + jnp.einsum("oc,nct->not", weight[:, :, kk], xp[:, :, kk:kk + t])
    out = out + bias[None, :, None]
    return out.reshape(b_sz, s_sz, c_out, t)


def _init_conv_params(key, c_in, c_out, k):
    """PyTorch Conv1d default init: U(-b, b) with b = 1/sqrt(C_in * K)."""
    kw, kb = jax.random.split(key)
    bound = 1.0 / (c_in * k) ** 0.5
    w = jax.random.uniform(kw, (c_out, c_in, k),
                           minval=-bound, maxval=bound, dtype=jnp.float32)
    b = jax.random.uniform(kb, (c_out,),
                           minval=-bound, maxval=bound, dtype=jnp.float32)
    return w, b


if __name__ == "__main__":
    key = jax.random.PRNGKey(0)
    k1, k2, k3, k4 = jax.random.split(key, 4)

    # Test 1: the module's demo shape (odd K, tiny T -> halo fallback path,
    # single grid block, single in-kernel chunk).
    x1 = jax.random.normal(k1, (2, 3, 4, 16), dtype=jnp.float32)
    w1, b1 = _init_conv_params(k2, 4, 8, 3)
    out1 = jax.block_until_ready(custom_conv1d(x1, w1, b1))
    assert out1.shape == (2, 3, 8, 16), out1.shape
    ref1 = _reference_conv1d(x1, w1, b1)
    assert jnp.allclose(out1, ref1, atol=1e-5, rtol=1e-5), "mismatch vs reference (T=16)"

    # Test 2: lane-dense T (multiple of 128) exercising the roll+mask fast path,
    # even K, and a forced small block so the multi-block grid, the clamped partial
    # final block (N % TN != 0) and the multi-chunk in-kernel loop are all covered.
    x2 = jax.random.normal(k3, (2, 8, 4, 256), dtype=jnp.float32)   # N = 16
    w2, b2 = _init_conv_params(k4, 4, 8, 4)
    out2 = jax.block_until_ready(custom_conv1d(x2, w2, b2, samples_per_block=12))
    assert out2.shape == (2, 8, 8, 256), out2.shape
    ref2 = _reference_conv1d(x2, w2, b2)
    assert jnp.allclose(out2, ref2, atol=1e-5, rtol=1e-5), "mismatch vs reference (T=256)"

    print("KERNEL_OK")
</pallas_src>

<mosaic_0001>
module attributes {stable_mosaic.version = 11 : i64} {
  func.func @_conv1d_same_kernel(%arg0: i32, %arg1: memref<6x4x16xf32, #tpu.memory_space<vmem>>, %arg2: memref<3x4x8x1xf32, #tpu.memory_space<vmem>>, %arg3: memref<8x1xf32, #tpu.memory_space<vmem>>, %arg4: memref<6x8x16xf32, #tpu.memory_space<vmem>>, %arg5: memref<6x4x18xf32, #tpu.memory_space<vmem>>) attributes {dimension_semantics = [#tpu.dimension_semantics<parallel>], iteration_bounds = array<i64: 1>, scalar_prefetch = 0 : i64, scratch_operands = 1 : i64, tpu.core_type = #tpu.core_type<tc>, window_params = [{transform_indices = @transform_0, window_bounds = array<i64: 6, 4, 16>}, {pipeline_mode = #tpu.pipeline_mode<synchronous>, transform_indices = @transform_1, window_bounds = array<i64: 3, 4, 8, 1>}, {pipeline_mode = #tpu.pipeline_mode<synchronous>, transform_indices = @transform_2, window_bounds = array<i64: 8, 1>}, {transform_indices = @transform_3, window_bounds = array<i64: 6, 8, 16>}]} {
    %c0 = arith.constant 0 : index
    %c0_0 = arith.constant 0 : index
    %0 = vector.load %arg3[%c0, %c0_0] : memref<8x1xf32, #tpu.memory_space<vmem>>, vector<8x1xf32>
    %cst = arith.constant 0.000000e+00 : f32
    %1 = vector.broadcast %cst : f32 to vector<6x4x1xf32>
    %c0_1 = arith.constant 0 : index
    %c0_2 = arith.constant 0 : index
    %c0_3 = arith.constant 0 : index
    %2 = vector.load %arg5[%c0_1, %c0_2, %c0_3] : memref<6x4x18xf32, #tpu.memory_space<vmem>>, vector<6x4x1xf32>
    tpu.vector_store %arg5[%c0_1, %c0_2, %c0_3], %1 {strides = array<i32>} : memref<6x4x18xf32, #tpu.memory_space<vmem>>, vector<6x4x1xf32>,
    %cst_4 = arith.constant 0.000000e+00 : f32
    %3 = vector.broadcast %cst_4 : f32 to vector<6x4x1xf32>
    %c0_5 = arith.constant 0 : index
    %c0_6 = arith.constant 0 : index
    %c17 = arith.constant 17 : index
    %4 = vector.load %arg5[%c0_5, %c0_6, %c17] : memref<6x4x18xf32, #tpu.memory_space<vmem>>, vector<6x4x1xf32>
    tpu.vector_store %arg5[%c0_5, %c0_6, %c17], %3 {strides = array<i32>} : memref<6x4x18xf32, #tpu.memory_space<vmem>>, vector<6x4x1xf32>,
    %c0_7 = arith.constant 0 : index
    %c0_8 = arith.constant 0 : index
    %c0_9 = arith.constant 0 : index
    %5 = vector.load %arg1[%c0_7, %c0_8, %c0_9] : memref<6x4x16xf32, #tpu.memory_space<vmem>>, vector<6x4x16xf32>
    %c0_10 = arith.constant 0 : index
    %c0_11 = arith.constant 0 : index
    %c1 = arith.constant 1 : index
    %6 = vector.load %arg5[%c0_10, %c0_11, %c1] : memref<6x4x18xf32, #tpu.memory_space<vmem>>, vector<6x4x16xf32>
    tpu.vector_store %arg5[%c0_10, %c0_11, %c1], %5 {strides = array<i32>} : memref<6x4x18xf32, #tpu.memory_space<vmem>>, vector<6x4x16xf32>,
    %7 = vector.shape_cast %0 : vector<8x1xf32> to vector<1x8x1xf32>
    %8 = vector.broadcast %7 : vector<1x8x1xf32> to vector<6x8x16xf32>
    %c0_12 = arith.constant 0 : index
    %c0_13 = arith.constant 0 : index
    %c0_14 = arith.constant 0 : index
    %c0_15 = arith.constant 0 : index
    %9 = vector.load %arg2[%c0_12, %c0_13, %c0_14, %c0_15] : memref<3x4x8x1xf32, #tpu.memory_space<vmem>>, vector<1x1x8x1xf32>
    %10 = vector.shape_cast %9 : vector<1x1x8x1xf32> to vector<8x1xf32>
    %c0_16 = arith.constant 0 : index
    %c0_17 = arith.constant 0 : index
    %c0_18 = arith.constant 0 : index
    %11 = vector.load %arg5[%c0_16, %c0_17, %c0_18] : memref<6x4x18xf32, #tpu.memory_space<vmem>>, vector<6x1x16xf32>
    %12 = vector.shape_cast %10 : vector<8x1xf32> to vector<1x8x1xf32>
    %13 = vector.broadcast %11 : vector<6x1x16xf32> to vector<6x8x16xf32>
    %14 = vector.broadcast %12 : vector<1x8x1xf32> to vector<6x8x16xf32>
    %15 = arith.mulf %13, %14 : vector<6x8x16xf32>
    %16 = arith.addf %8, %15 : vector<6x8x16xf32>
    %c0_19 = arith.constant 0 : index
    %c1_20 = arith.constant 1 : index
    %c0_21 = arith.constant 0 : index
    %c0_22 = arith.constant 0 : index
    %17 = vector.load %arg2[%c0_19, %c1_20, %c0_21, %c0_22] : memref<3x4x8x1xf32, #tpu.memory_space<vmem>>, vector<1x1x8x1xf32>
    %18 = vector.shape_cast %17 : vector<1x1x8x1xf32> to vector<8x1xf32>
    %c0_23 = arith.constant 0 : index
    %c1_24 = arith.constant 1 : index
    %c0_25 = arith.constant 0 : index
    %19 = vector.load %arg5[%c0_23, %c1_24, %c0_25] : memref<6x4x18xf32, #tpu.memory_space<vmem>>, vector<6x1x16xf32>
    %20 = vector.shape_cast %18 : vector<8x1xf32> to vector<1x8x1xf32>
    %21 = vector.broadcast %19 : vector<6x1x16xf32> to vector<6x8x16xf32>
    %22 = vector.broadcast %20 : vector<1x8x1xf32> to vector<6x8x16xf32>
    %23 = arith.mulf %21, %22 : vector<6x8x16xf32>
    %24 = arith.addf %16, %23 : vector<6x8x16xf32>
    %c0_26 = arith.constant 0 : index
    %c2 = arith.constant 2 : index
    %c0_27 = arith.constant 0 : index
    %c0_28 = arith.constant 0 : index
    %25 = vector.load %arg2[%c0_26, %c2, %c0_27, %c0_28] : memref<3x4x8x1xf32, #tpu.memory_space<vmem>>, vector<1x1x8x1xf32>
    %26 = vector.shape_cast %25 : vector<1x1x8x1xf32> to vector<8x1xf32>
    %c0_29 = arith.constant 0 : index
    %c2_30 = arith.constant 2 : index
    %c0_31 = arith.constant 0 : index
    %27 = vector.load %arg5[%c0_29, %c2_30, %c0_31] : memref<6x4x18xf32, #tpu.memory_space<vmem>>, vector<6x1x16xf32>
    %28 = vector.shape_cast %26 : vector<8x1xf32> to vector<1x8x1xf32>
    %29 = vector.broadcast %27 : vector<6x1x16xf32> to vector<6x8x16xf32>
    %30 = vector.broadcast %28 : vector<1x8x1xf32> to vector<6x8x16xf32>
    %31 = arith.mulf %29, %30 : vector<6x8x16xf32>
    %32 = arith.addf %24, %31 : vector<6x8x16xf32>
    %c0_32 = arith.constant 0 : index
    %c3 = arith.constant 3 : index
    %c0_33 = arith.constant 0 : index
    %c0_34 = arith.constant 0 : index
    %33 = vector.load %arg2[%c0_32, %c3, %c0_33, %c0_34] : memref<3x4x8x1xf32, #tpu.memory_space<vmem>>, vector<1x1x8x1xf32>
    %34 = vector.shape_cast %33 : vector<1x1x8x1xf32> to vector<8x1xf32>
    %c0_35 = arith.constant 0 : index
    %c3_36 = arith.constant 3 : index
    %c0_37 = arith.constant 0 : index
    %35 = vector.load %arg5[%c0_35, %c3_36, %c0_37] : memref<6x4x18xf32, #tpu.memory_space<vmem>>, vector<6x1x16xf32>
    %36 = vector.shape_cast %34 : vector<8x1xf32> to vector<1x8x1xf32>
    %37 = vector.broadcast %35 : vector<6x1x16xf32> to vector<6x8x16xf32>
    %38 = vector.broadcast %36 : vector<1x8x1xf32> to vector<6x8x16xf32>
    %39 = arith.mulf %37, %38 : vector<6x8x16xf32>
    %40 = arith.addf %32, %39 : vector<6x8x16xf32>
    %c1_38 = arith.constant 1 : index
    %c0_39 = arith.constant 0 : index
    %c0_40 = arith.constant 0 : index
    %c0_41 = arith.constant 0 : index
    %41 = vector.load %arg2[%c1_38, %c0_39, %c0_40, %c0_41] : memref<3x4x8x1xf32, #tpu.memory_space<vmem>>, vector<1x1x8x1xf32>
    %42 = vector.shape_cast %41 : vector<1x1x8x1xf32> to vector<8x1xf32>
    %c0_42 = arith.constant 0 : index
    %c0_43 = arith.constant 0 : index
    %c1_44 = arith.constant 1 : index
    %43 = vector.load %arg5[%c0_42, %c0_43, %c1_44] : memref<6x4x18xf32, #tpu.memory_space<vmem>>, vector<6x1x16xf32>
    %44 = vector.shape_cast %42 : vector<8x1xf32> to vector<1x8x1xf32>
    %45 = vector.broadcast %43 : vector<6x1x16xf32> to vector<6x8x16xf32>
    %46 = vector.broadcast %44 : vector<1x8x1xf32> to vector<6x8x16xf32>
    %47 = arith.mulf %45, %46 : vector<6x8x16xf32>
    %48 = arith.addf %40, %47 : vector<6x8x16xf32>
    %c1_45 = arith.constant 1 : index
    %c1_46 = arith.constant 1 : index
    %c0_47 = arith.constant 0 : index
    %c0_48 = arith.constant 0 : index
    %49 = vector.load %arg2[%c1_45, %c1_46, %c0_47, %c0_48] : memref<3x4x8x1xf32, #tpu.memory_space<vmem>>, vector<1x1x8x1xf32>
    %50 = vector.shape_cast %49 : vector<1x1x8x1xf32> to vector<8x1xf32>
    %c0_49 = arith.constant 0 : index
    %c1_50 = arith.constant 1 : index
    %c1_51 = arith.constant 1 : index
    %51 = vector.load %arg5[%c0_49, %c1_50, %c1_51] : memref<6x4x18xf32, #tpu.memory_space<vmem>>, vector<6x1x16xf32>
    %52 = vector.shape_cast %50 : vector<8x1xf32> to vector<1x8x1xf32>
    %53 = vector.broadcast %51 : vector<6x1x16xf32> to vector<6x8x16xf32>
    %54 = vector.broadcast %52 : vector<1x8x1xf32> to vector<6x8x16xf32>
    %55 = arith.mulf %53, %54 : vector<6x8x16xf32>
    %56 = arith.addf %48, %55 : vector<6x8x16xf32>
    %c1_52 = arith.constant 1 : index
    %c2_53 = arith.constant 2 : index
    %c0_54 = arith.constant 0 : index
    %c0_55 = arith.constant 0 : index
    %57 = vector.load %arg2[%c1_52, %c2_53, %c0_54, %c0_55] : memref<3x4x8x1xf32, #tpu.memory_space<vmem>>, vector<1x1x8x1xf32>
    %58 = vector.shape_cast %57 : vector<1x1x8x1xf32> to vector<8x1xf32>
    %c0_56 = arith.constant 0 : index
    %c2_57 = arith.constant 2 : index
    %c1_58 = arith.constant 1 : index
    %59 = vector.load %arg5[%c0_56, %c2_57, %c1_58] : memref<6x4x18xf32, #tpu.memory_space<vmem>>, vector<6x1x16xf32>
    %60 = vector.shape_cast %58 : vector<8x1xf32> to vector<1x8x1xf32>
    %61 = vector.broadcast %59 : vector<6x1x16xf32> to vector<6x8x16xf32>
    %62 = vector.broadcast %60 : vector<1x8x1xf32> to vector<6x8x16xf32>
    %63 = arith.mulf %61, %62 : vector<6x8x16xf32>
    %64 = arith.addf %56, %63 : vector<6x8x16xf32>
    %c1_59 = arith.constant 1 : index
    %c3_60 = arith.constant 3 : index
    %c0_61 = arith.constant 0 : index
    %c0_62 = arith.constant 0 : index
    %65 = vector.load %arg2[%c1_59, %c3_60, %c0_61, %c0_62] : memref<3x4x8x1xf32, #tpu.memory_space<vmem>>, vector<1x1x8x1xf32>
    %66 = vector.shape_cast %65 : vector<1x1x8x1xf32> to vector<8x1xf32>
    %c0_63 = arith.constant 0 : index
    %c3_64 = arith.constant 3 : index
    %c1_65 = arith.constant 1 : index
    %67 = vector.load %arg5[%c0_63, %c3_64, %c1_65] : memref<6x4x18xf32, #tpu.memory_space<vmem>>, vector<6x1x16xf32>
    %68 = vector.shape_cast %66 : vector<8x1xf32> to vector<1x8x1xf32>
    %69 = vector.broadcast %67 : vector<6x1x16xf32> to vector<6x8x16xf32>
    %70 = vector.broadcast %68 : vector<1x8x1xf32> to vector<6x8x16xf32>
    %71 = arith.mulf %69, %70 : vector<6x8x16xf32>
    %72 = arith.addf %64, %71 : vector<6x8x16xf32>
    %c2_66 = arith.constant 2 : index
    %c0_67 = arith.constant 0 : index
    %c0_68 = arith.constant 0 : index
    %c0_69 = arith.constant 0 : index
    %73 = vector.load %arg2[%c2_66, %c0_67, %c0_68, %c0_69] : memref<3x4x8x1xf32, #tpu.memory_space<vmem>>, vector<1x1x8x1xf32>
    %74 = vector.shape_cast %73 : vector<1x1x8x1xf32> to vector<8x1xf32>
    %c0_70 = arith.constant 0 : index
    %c0_71 = arith.constant 0 : index
    %c2_72 = arith.constant 2 : index
    %75 = vector.load %arg5[%c0_70, %c0_71, %c2_72] : memref<6x4x18xf32, #tpu.memory_space<vmem>>, vector<6x1x16xf32>
    %76 = vector.shape_cast %74 : vector<8x1xf32> to vector<1x8x1xf32>
    %77 = vector.broadcast %75 : vector<6x1x16xf32> to vector<6x8x16xf32>
    %78 = vector.broadcast %76 : vector<1x8x1xf32> to vector<6x8x16xf32>
    %79 = arith.mulf %77, %78 : vector<6x8x16xf32>
    %80 = arith.addf %72, %79 : vector<6x8x16xf32>
    %c2_73 = arith.constant 2 : index
    %c1_74 = arith.constant 1 : index
    %c0_75 = arith.constant 0 : index
    %c0_76 = arith.constant 0 : index
    %81 = vector.load %arg2[%c2_73, %c1_74, %c0_75, %c0_76] : memref<3x4x8x1xf32, #tpu.memory_space<vmem>>, vector<1x1x8x1xf32>
    %82 = vector.shape_cast %81 : vector<1x1x8x1xf32> to vector<8x1xf32>
    %c0_77 = arith.constant 0 : index
    %c1_78 = arith.constant 1 : index
    %c2_79 = arith.constant 2 : index
    %83 = vector.load %arg5[%c0_77, %c1_78, %c2_79] : memref<6x4x18xf32, #tpu.memory_space<vmem>>, vector<6x1x16xf32>
    %84 = vector.shape_cast %82 : vector<8x1xf32> to vector<1x8x1xf32>
    %85 = vector.broadcast %83 : vector<6x1x16xf32> to vector<6x8x16xf32>
    %86 = vector.broadcast %84 : vector<1x8x1xf32> to vector<6x8x16xf32>
    %87 = arith.mulf %85, %86 : vector<6x8x16xf32>
    %88 = arith.addf %80, %87 : vector<6x8x16xf32>
    %c2_80 = arith.constant 2 : index
    %c2_81 = arith.constant 2 : index
    %c0_82 = arith.constant 0 : index
    %c0_83 = arith.constant 0 : index
    %89 = vector.load %arg2[%c2_80, %c2_81, %c0_82, %c0_83] : memref<3x4x8x1xf32, #tpu.memory_space<vmem>>, vector<1x1x8x1xf32>
    %90 = vector.shape_cast %89 : vector<1x1x8x1xf32> to vector<8x1xf32>
    %c0_84 = arith.constant 0 : index
    %c2_85 = arith.constant 2 : index
    %c2_86 = arith.constant 2 : index
    %91 = vector.load %arg5[%c0_84, %c2_85, %c2_86] : memref<6x4x18xf32, #tpu.memory_space<vmem>>, vector<6x1x16xf32>
    %92 = vector.shape_cast %90 : vector<8x1xf32> to vector<1x8x1xf32>
    %93 = vector.broadcast %91 : vector<6x1x16xf32> to vector<6x8x16xf32>
    %94 = vector.broadcast %92 : vector<1x8x1xf32> to vector<6x8x16xf32>
    %95 = arith.mulf %93, %94 : vector<6x8x16xf32>
    %96 = arith.addf %88, %95 : vector<6x8x16xf32>
    %c2_87 = arith.constant 2 : index
    %c3_88 = arith.constant 3 : index
    %c0_89 = arith.constant 0 : index
    %c0_90 = arith.constant 0 : index
    %97 = vector.load %arg2[%c2_87, %c3_88, %c0_89, %c0_90] : memref<3x4x8x1xf32, #tpu.memory_space<vmem>>, vector<1x1x8x1xf32>
    %98 = vector.shape_cast %97 : vector<1x1x8x1xf32> to vector<8x1xf32>
    %c0_91 = arith.constant 0 : index
    %c3_92 = arith.constant 3 : index
    %c2_93 = arith.constant 2 : index
    %99 = vector.load %arg5[%c0_91, %c3_92, %c2_93] : memref<6x4x18xf32, #tpu.memory_space<vmem>>, vector<6x1x16xf32>
    %100 = vector.shape_cast %98 : vector<8x1xf32> to vector<1x8x1xf32>
    %101 = vector.broadcast %99 : vector<6x1x16xf32> to vector<6x8x16xf32>
    %102 = vector.broadcast %100 : vector<1x8x1xf32> to vector<6x8x16xf32>
    %103 = arith.mulf %101, %102 : vector<6x8x16xf32>
    %104 = arith.addf %96, %103 : vector<6x8x16xf32>
    %c0_94 = arith.constant 0 : index
    %c0_95 = arith.constant 0 : index
    %c0_96 = arith.constant 0 : index
    %105 = vector.load %arg4[%c0_94, %c0_95, %c0_96] : memref<6x8x16xf32, #tpu.memory_space<vmem>>, vector<6x8x16xf32>
    tpu.vector_store %arg4[%c0_94, %c0_95, %c0_96], %104 {strides = array<i32>} : memref<6x8x16xf32, #tpu.memory_space<vmem>>, vector<6x8x16xf32>,
    return
  }
  func.func @transform_0(%arg0: i32) -> (i32, i32, i32) {
    %c0_i32 = arith.constant 0 : i32
    %c0_i32_0 = arith.constant 0 : i32
    %c0_i32_1 = arith.constant 0 : i32
    return %arg0, %c0_i32, %c0_i32_0 : i32, i32, i32
  }
  func.func @transform_1(%arg0: i32) -> (i32, i32, i32, i32) {
    %c0_i32 = arith.constant 0 : i32
    %c0_i32_0 = arith.constant 0 : i32
    %c0_i32_1 = arith.constant 0 : i32
    %c0_i32_2 = arith.constant 0 : i32
    %c0_i32_3 = arith.constant 0 : i32
    return %c0_i32, %c0_i32_0, %c0_i32_1, %c0_i32_2 : i32, i32, i32, i32
  }
  func.func @transform_2(%arg0: i32) -> (i32, i32) {
    %c0_i32 = arith.constant 0 : i32
    %c0_i32_0 = arith.constant 0 : i32
    %c0_i32_1 = arith.constant 0 : i32
    return %c0_i32, %c0_i32_0 : i32, i32
  }
  func.func @transform_3(%arg0: i32) -> (i32, i32, i32) {
    %c0_i32 = arith.constant 0 : i32
    %c0_i32_0 = arith.constant 0 : i32
    %c0_i32_1 = arith.constant 0 : i32
    return %arg0, %c0_i32, %c0_i32_0 : i32, i32, i32
  }
}

</mosaic_0001>

<llo_original>
// kernel: custom_conv1d.1
$region0: #{custom_conv1d.1}
  #allocation0 [shape = 'u32[]', space=smem, size = 0x4, offset = 0x4, fixed_abs, tag = 'smem constant byte address 0x4 - core index']
  #allocation1 [shape = 'u32[144,128]{1,0:T(1,128)}', space=vmem, size = 0x12000, scoped, tag = 'internal scratch']
  #allocation2 [shape = 'f32[6,4,18]{2,1,0:T(4,128)}', space=vmem, size = 0x3000, scoped, tag = 'scratch operand']
  %s0 = inlined_call_operand.vmem [shape: f32[6,4,16], index: 0, kind: input, shape index: {}]
  %s1 = inlined_call_operand.vmem [shape: f32[3,4,8,1], index: 1, kind: input, shape index: {}]
  %s2 = inlined_call_operand.vmem [shape: f32[8,1], index: 2, kind: input, shape index: {}]
  %s3 = inlined_call_operand.hbm [shape: f32[6,8,16], index: 3, kind: output, shape index: {}]
  %s4 = sld [smem:[#allocation0]]
  $region22: #{custom_conv1d.1} parent=0
    _
  %s6 = ssub.s32 1, %s4
  %s7 = scalar_select 0, %s6, %s4
  $region1: #{custom_conv1d.1} parent=0
    #allocation3 [shape = 'u8[24576]{0}', space=vmem, size = 0x6000, scoped, tag = 'output window, operand 0, single buffered']
    #allocation4 [shape = 's32[1]{0}', space=sflag, size = 0x4, scoped, tag = 'scoped memory for custom_conv1d.1']
    %8 = vsyncpa [#allocation4], 0
    // Predicated region
    $region2: #{custom_conv1d.1} parent=1 // pred_check
      _
    $region3: #{custom_conv1d.1} parent=1 // pred_check_branch
      %10 = sbr.rel (0) target = $region5
    $region4: #{custom_conv1d.1} parent=1 // pred_region
      _
    $region5: #{custom_conv1d.1} parent=1 // pred_fallthru
      _
    // Predicated region
    $region6: #{custom_conv1d.1} parent=1 // pred_check
      _
    $region7: #{custom_conv1d.1} parent=1 // pred_check_branch
      %12 = sbr.rel (0) target = $region9
    $region8: #{custom_conv1d.1} parent=1 // pred_region
      _
    $region9: #{custom_conv1d.1} parent=1 // pred_fallthru
      _
    // Predicated region
    $region10: #{custom_conv1d.1} parent=1 // pred_check
      _
    $region11: #{custom_conv1d.1} parent=1 // pred_check_branch
      %14 = sbr.rel (0) target = $region13
    $region12: #{custom_conv1d.1} parent=1 // pred_region
      _
    $region13: #{custom_conv1d.1} parent=1 // pred_fallthru
      _
    %v15 = vld [vmem:[%s2] sm:$0xff]
    %vm16 = vcmask 3072
    %17 = vst.msk [vmem:[#allocation2] sm:$0xf] %vm16, 0.0
    %18 = vst.msk [vmem:[#allocation2 + $0x4] sm:$0xf] %vm16, 0.0
    %19 = vst.msk [vmem:[#allocation2 + $0x8] sm:$0xf] %vm16, 0.0
    %20 = vst.msk [vmem:[#allocation2 + $0xc] sm:$0xf] %vm16, 0.0
    %21 = vst.msk [vmem:[#allocation2 + $0x10] sm:$0xf] %vm16, 0.0
    %22 = vst.msk [vmem:[#allocation2 + $0x14] sm:$0xf] %vm16, 0.0
    %vm23 = vcmask 142472
    %24 = vst.msk [vmem:[#allocation2] sm:$0xf] %vm23, 0.0
    %25 = vst.msk [vmem:[#allocation2 + $0x4] sm:$0xf] %vm23, 0.0
    %26 = vst.msk [vmem:[#allocation2 + $0x8] sm:$0xf] %vm23, 0.0
    %27 = vst.msk [vmem:[#allocation2 + $0xc] sm:$0xf] %vm23, 0.0
    %28 = vst.msk [vmem:[#allocation2 + $0x10] sm:$0xf] %vm23, 0.0
    %29 = vst.msk [vmem:[#allocation2 + $0x14] sm:$0xf] %vm23, 0.0
    %v30 = vld [vmem:[%s0] sm:$0xf]
    %v31 = vld [vmem:[%s0 + $0x4] sm:$0xf]
    %v32 = vld [vmem:[%s0 + $0x8] sm:$0xf]
    %v33 = vld [vmem:[%s0 + $0xc] sm:$0xf]
    %v34 = vld [vmem:[%s0 + $0x10] sm:$0xf]
    %v35 = vld [vmem:[%s0 + $0x14] sm:$0xf]
    %42 = vrot.lane.b32.xlu0 %v30, 1
    %v43 = vpop.permute.xlu0 %42
    %44 = vrot.lane.b32.xlu0 %v31, 1
    %v45 = vpop.permute.xlu0 %44
    %46 = vrot.lane.b32.xlu0 %v32, 1
    %v47 = vpop.permute.xlu0 %46
    %48 = vrot.lane.b32.xlu0 %v33, 1
    %v49 = vpop.permute.xlu0 %48
    %50 = vrot.lane.b32.xlu0 %v34, 1
    %v51 = vpop.permute.xlu0 %50
    %52 = vrot.lane.b32.xlu0 %v35, 1
    %v53 = vpop.permute.xlu0 %52
    %vm60 = vcmask 134152
    %61 = vst.msk [vmem:[#allocation2] sm:$0xf] %vm60, %v43
    %62 = vst.msk [vmem:[#allocation2 + $0x4] sm:$0xf] %vm60, %v45
    %63 = vst.msk [vmem:[#allocation2 + $0x8] sm:$0xf] %vm60, %v47
    %64 = vst.msk [vmem:[#allocation2 + $0xc] sm:$0xf] %vm60, %v49
    %65 = vst.msk [vmem:[#allocation2 + $0x10] sm:$0xf] %vm60, %v51
    %66 = vst.msk [vmem:[#allocation2 + $0x14] sm:$0xf] %vm60, %v53
    %68 = vset.pattern.permute.xlu0 0
    %69 = vperm.xlu0 %68, %v15
    %v70 = vpop.permute.xlu0 %69
    %v72 = vld [vmem:[%s1] sm:$0xff]
    %v73 = vld [vmem:[#allocation2] sm:$0x1]
    %v74 = vld [vmem:[#allocation2 + $0x4] sm:$0x1]
    %v75 = vld [vmem:[#allocation2 + $0x8] sm:$0x1]
    %v76 = vld [vmem:[#allocation2 + $0xc] sm:$0x1]
    %v77 = vld [vmem:[#allocation2 + $0x10] sm:$0x1]
    %v78 = vld [vmem:[#allocation2 + $0x14] sm:$0x1]
    %v79 = vlaneseq
    %v80 = vshrl.u32 %v79, 7
    %v81 = vsub.s32 0, %v80
    %v82 = vrot.slane %v73, %v81
    %v83 = vlaneseq
    %v84 = vshrl.u32 %v83, 7
    %v85 = vsub.s32 0, %v84
    %v86 = vrot.slane %v74, %v85
    %v87 = vlaneseq
    %v88 = vshrl.u32 %v87, 7
    %v89 = vsub.s32 0, %v88
    %v90 = vrot.slane %v75, %v89
    %v91 = vlaneseq
    %v92 = vshrl.u32 %v91, 7
    %v93 = vsub.s32 0, %v92
    %v94 = vrot.slane %v76, %v93
    %v95 = vlaneseq
    %v96 = vshrl.u32 %v95, 7
    %v97 = vsub.s32 0, %v96
    %v98 = vrot.slane %v77, %v97
    %v99 = vlaneseq
    %v100 = vshrl.u32 %v99, 7
    %v101 = vsub.s32 0, %v100
    %v102 = vrot.slane %v78, %v101
    %104 = vset.pattern.permute.xlu0 0
    %105 = vperm.xlu0 %104, %v72
    %v106 = vpop.permute.xlu0 %105
    %v108 = vmul.f32 %v82, %v106
    %v109 = vmul.f32 %v86, %v106
    %v110 = vmul.f32 %v90, %v106
    %v111 = vmul.f32 %v94, %v106
    %v112 = vmul.f32 %v98, %v106
    %v113 = vmul.f32 %v102, %v106
    %v114 = vadd.f32 %v70, %v108
    %v115 = vadd.f32 %v70, %v109
    %v116 = vadd.f32 %v70, %v110
    %v117 = vadd.f32 %v70, %v111
    %v118 = vadd.f32 %v70, %v112
    %v119 = vadd.f32 %v70, %v113
    %s120 = scalar_lea.vmem %s1, 8
    %v121 = vld [vmem:[%s120] sm:$0xff]
    %v122 = vld [vmem:[#allocation2 + $0x1] sm:$0x1]
    %v123 = vld [vmem:[#allocation2 + $0x5] sm:$0x1]
    %v124 = vld [vmem:[#allocation2 + $0x9] sm:$0x1]
    %v125 = vld [vmem:[#allocation2 + $0xd] sm:$0x1]
    %v126 = vld [vmem:[#allocation2 + $0x11] sm:$0x1]
    %v127 = vld [vmem:[#allocation2 + $0x15] sm:$0x1]
    %v128 = vlaneseq
    %v129 = vshrl.u32 %v128, 7
    %v130 = vsub.s32 0, %v129
    %v131 = vrot.slane %v122, %v130
    %v132 = vlaneseq
    %v133 = vshrl.u32 %v132, 7
    %v134 = vsub.s32 0, %v133
    %v135 = vrot.slane %v123, %v134
    %v136 = vlaneseq
    %v137 = vshrl.u32 %v136, 7
    %v138 = vsub.s32 0, %v137
    %v139 = vrot.slane %v124, %v138
    %v140 = vlaneseq
    %v141 = vshrl.u32 %v140, 7
    %v142 = vsub.s32 0, %v141
    %v143 = vrot.slane %v125, %v142
    %v144 = vlaneseq
    %v145 = vshrl.u32 %v144, 7
    %v146 = vsub.s32 0, %v145
    %v147 = vrot.slane %v126, %v146
    %v148 = vlaneseq
    %v149 = vshrl.u32 %v148, 7
    %v150 = vsub.s32 0, %v149
    %v151 = vrot.slane %v127, %v150
    %153 = vset.pattern.permute.xlu0 0
    %154 = vperm.xlu0 %153, %v121
    %v155 = vpop.permute.xlu0 %154
    %v157 = vmul.f32 %v131, %v155
    %v158 = vmul.f32 %v135, %v155
    %v159 = vmul.f32 %v139, %v155
    %v160 = vmul.f32 %v143, %v155
    %v161 = vmul.f32 %v147, %v155
    %v162 = vmul.f32 %v151, %v155
    %v163 = vadd.f32 %v114, %v157
    %v164 = vadd.f32 %v115, %v158
    %v165 = vadd.f32 %v116, %v159
    %v166 = vadd.f32 %v117, %v160
    %v167 = vadd.f32 %v118, %v161
    %v168 = vadd.f32 %v119, %v162
    %s169 = scalar_lea.vmem %s1, 16
    %v170 = vld [vmem:[%s169] sm:$0xff]
    %v171 = vld [vmem:[#allocation2 + $0x2] sm:$0x1]
    %v172 = vld [vmem:[#allocation2 + $0x6] sm:$0x1]
    %v173 = vld [vmem:[#allocation2 + $0xa] sm:$0x1]
    %v174 = vld [vmem:[#allocation2 + $0xe] sm:$0x1]
    %v175 = vld [vmem:[#allocation2 + $0x12] sm:$0x1]
    %v176 = vld [vmem:[#allocation2 + $0x16] sm:$0x1]
    %v177 = vlaneseq
    %v178 = vshrl.u32 %v177, 7
    %v179 = vsub.s32 0, %v178
    %v180 = vrot.slane %v171, %v179
    %v181 = vlaneseq
    %v182 = vshrl.u32 %v181, 7
    %v183 = vsub.s32 0, %v182
    %v184 = vrot.slane %v172, %v183
    %v185 = vlaneseq
    %v186 = vshrl.u32 %v185, 7
    %v187 = vsub.s32 0, %v186
    %v188 = vrot.slane %v173, %v187
    %v189 = vlaneseq
    %v190 = vshrl.u32 %v189, 7
    %v191 = vsub.s32 0, %v190
    %v192 = vrot.slane %v174, %v191
    %v193 = vlaneseq
    %v194 = vshrl.u32 %v193, 7
    %v195 = vsub.s32 0, %v194
    %v196 = vrot.slane %v175, %v195
    %v197 = vlaneseq
    %v198 = vshrl.u32 %v197, 7
    %v199 = vsub.s32 0, %v198
    %v200 = vrot.slane %v176, %v199
    %202 = vset.pattern.permute.xlu0 0
    %203 = vperm.xlu0 %202, %v170
    %v204 = vpop.permute.xlu0 %203
    %v206 = vmul.f32 %v180, %v204
    %v207 = vmul.f32 %v184, %v204
    %v208 = vmul.f32 %v188, %v204
    %v209 = vmul.f32 %v192, %v204
    %v210 = vmul.f32 %v196, %v204
    %v211 = vmul.f32 %v200, %v204
    %v212 = vadd.f32 %v163, %v206
    %v213 = vadd.f32 %v164, %v207
    %v214 = vadd.f32 %v165, %v208
    %v215 = vadd.f32 %v166, %v209
    %v216 = vadd.f32 %v167, %v210
    %v217 = vadd.f32 %v168, %v211
    %s218 = scalar_lea.vmem %s1, 24
    %v219 = vld [vmem:[%s218] sm:$0xff]
    %v220 = vld [vmem:[#allocation2 + $0x3] sm:$0x1]
    %v221 = vld [vmem:[#allocation2 + $0x7] sm:$0x1]
    %v222 = vld [vmem:[#allocation2 + $0xb] sm:$0x1]
    %v223 = vld [vmem:[#allocation2 + $0xf] sm:$0x1]
    %v224 = vld [vmem:[#allocation2 + $0x13] sm:$0x1]
    %v225 = vld [vmem:[#allocation2 + $0x17] sm:$0x1]
    %v226 = vlaneseq
    %v227 = vshrl.u32 %v226, 7
    %v228 = vsub.s32 0, %v227
    %v229 = vrot.slane %v220, %v228
    %v230 = vlaneseq
    %v231 = vshrl.u32 %v230, 7
    %v232 = vsub.s32 0, %v231
    %v233 = vrot.slane %v221, %v232
    %v234 = vlaneseq
    %v235 = vshrl.u32 %v234, 7
    %v236 = vsub.s32 0, %v235
    %v237 = vrot.slane %v222, %v236
    %v238 = vlaneseq
    %v239 = vshrl.u32 %v238, 7
    %v240 = vsub.s32 0, %v239
    %v241 = vrot.slane %v223, %v240
    %v242 = vlaneseq
    %v243 = vshrl.u32 %v242, 7
    %v244 = vsub.s32 0, %v243
    %v245 = vrot.slane %v224, %v244
    %v246 = vlaneseq
    %v247 = vshrl.u32 %v246, 7
    %v248 = vsub.s32 0, %v247
    %v249 = vrot.slane %v225, %v248
    %251 = vset.pattern.permute.xlu0 0
    %252 = vperm.xlu0 %251, %v219
    %v253 = vpop.permute.xlu0 %252
    %v255 = vmul.f32 %v229, %v253
    %v256 = vmul.f32 %v233, %v253
    %v257 = vmul.f32 %v237, %v253
    %v258 = vmul.f32 %v241, %v253
    %v259 = vmul.f32 %v245, %v253
    %v260 = vmul.f32 %v249, %v253
    %v261 = vadd.f32 %v212, %v255
    %v262 = vadd.f32 %v213, %v256
    %v263 = vadd.f32 %v214, %v257
    %v264 = vadd.f32 %v215, %v258
    %v265 = vadd.f32 %v216, %v259
    %v266 = vadd.f32 %v217, %v260
    %s267 = scalar_lea.vmem %s1, 32
    %v268 = vld [vmem:[%s267] sm:$0xff]
    %270 = vset.pattern.permute.xlu0 0
    %271 = vperm.xlu0 %270, %v268
    %v272 = vpop.permute.xlu0 %271
    %v274 = vmul.f32 %v82, %v272
    %v275 = vmul.f32 %v86, %v272
    %v276 = vmul.f32 %v90, %v272
    %v277 = vmul.f32 %v94, %v272
    %v278 = vmul.f32 %v98, %v272
    %v279 = vmul.f32 %v102, %v272
    %286 = vrot.lane.b32.xlu0 %v274, 127
    %v287 = vpop.permute.xlu0 %286
    %288 = vrot.lane.b32.xlu0 %v275, 127
    %v289 = vpop.permute.xlu0 %288
    %290 = vrot.lane.b32.xlu0 %v276, 127
    %v291 = vpop.permute.xlu0 %290
    %292 = vrot.lane.b32.xlu0 %v277, 127
    %v293 = vpop.permute.xlu0 %292
    %294 = vrot.lane.b32.xlu0 %v278, 127
    %v295 = vpop.permute.xlu0 %294
    %296 = vrot.lane.b32.xlu0 %v279, 127
    %v297 = vpop.permute.xlu0 %296
    %v304 = vadd.f32 %v261, %v287
    %v305 = vadd.f32 %v262, %v289
    %v306 = vadd.f32 %v263, %v291
    %v307 = vadd.f32 %v264, %v293
    %v308 = vadd.f32 %v265, %v295
    %v309 = vadd.f32 %v266, %v297
    %s310 = scalar_lea.vmem %s1, 40
    %v311 = vld [vmem:[%s310] sm:$0xff]
    %313 = vset.pattern.permute.xlu0 0
    %314 = vperm.xlu0 %313, %v311
    %v315 = vpop.permute.xlu0 %314
    %v317 = vmul.f32 %v131, %v315
    %v318 = vmul.f32 %v135, %v315
    %v319 = vmul.f32 %v139, %v315
    %v320 = vmul.f32 %v143, %v315
    %v321 = vmul.f32 %v147, %v315
    %v322 = vmul.f32 %v151, %v315
    %329 = vrot.lane.b32.xlu0 %v317, 127
    %v330 = vpop.permute.xlu0 %329
    %331 = vrot.lane.b32.xlu0 %v318, 127
    %v332 = vpop.permute.xlu0 %331
    %333 = vrot.lane.b32.xlu0 %v319, 127
    %v334 = vpop.permute.xlu0 %333
    %335 = vrot.lane.b32.xlu0 %v320, 127
    %v336 = vpop.permute.xlu0 %335
    %337 = vrot.lane.b32.xlu0 %v321, 127
    %v338 = vpop.permute.xlu0 %337
    %339 = vrot.lane.b32.xlu0 %v322, 127
    %v340 = vpop.permute.xlu0 %339
    %v347 = vadd.f32 %v304, %v330
    %v348 = vadd.f32 %v305, %v332
    %v349 = vadd.f32 %v306, %v334
    %v350 = vadd.f32 %v307, %v336
    %v351 = vadd.f32 %v308, %v338
    %v352 = vadd.f32 %v309, %v340
    %s353 = scalar_lea.vmem %s1, 48
    %v354 = vld [vmem:[%s353] sm:$0xff]
    %356 = vset.pattern.permute.xlu0 0
    %357 = vperm.xlu0 %356, %v354
    %v358 = vpop.permute.xlu0 %357
    %v360 = vmul.f32 %v180, %v358
    %v361 = vmul.f32 %v184, %v358
    %v362 = vmul.f32 %v188, %v358
    %v363 = vmul.f32 %v192, %v358
    %v364 = vmul.f32 %v196, %v358
    %v365 = vmul.f32 %v200, %v358
    %372 = vrot.lane.b32.xlu0 %v360, 127
    %v373 = vpop.permute.xlu0 %372
    %374 = vrot.lane.b32.xlu0 %v361, 127
    %v375 = vpop.permute.xlu0 %374
    %376 = vrot.lane.b32.xlu0 %v362, 127
    %v377 = vpop.permute.xlu0 %376
    %378 = vrot.lane.b32.xlu0 %v363, 127
    %v379 = vpop.permute.xlu0 %378
    %380 = vrot.lane.b32.xlu0 %v364, 127
    %v381 = vpop.permute.xlu0 %380
    %382 = vrot.lane.b32.xlu0 %v365, 127
    %v383 = vpop.permute.xlu0 %382
    %v390 = vadd.f32 %v347, %v373
    %v391 = vadd.f32 %v348, %v375
    %v392 = vadd.f32 %v349, %v377
    %v393 = vadd.f32 %v350, %v379
    %v394 = vadd.f32 %v351, %v381
    %v395 = vadd.f32 %v352, %v383
    %s396 = scalar_lea.vmem %s1, 56
    %v397 = vld [vmem:[%s396] sm:$0xff]
    %399 = vset.pattern.permute.xlu0 0
    %400 = vperm.xlu0 %399, %v397
    %v401 = vpop.permute.xlu0 %400
    %v403 = vmul.f32 %v229, %v401
    %v404 = vmul.f32 %v233, %v401
    %v405 = vmul.f32 %v237, %v401
    %v406 = vmul.f32 %v241, %v401
    %v407 = vmul.f32 %v245, %v401
    %v408 = vmul.f32 %v249, %v401
    %415 = vrot.lane.b32.xlu0 %v403, 127
    %v416 = vpop.permute.xlu0 %415
    %417 = vrot.lane.b32.xlu0 %v404, 127
    %v418 = vpop.permute.xlu0 %417
    %419 = vrot.lane.b32.xlu0 %v405, 127
    %v420 = vpop.permute.xlu0 %419
    %421 = vrot.lane.b32.xlu0 %v406, 127
    %v422 = vpop.permute.xlu0 %421
    %423 = vrot.lane.b32.xlu0 %v407, 127
    %v424 = vpop.permute.xlu0 %423
    %425 = vrot.lane.b32.xlu0 %v408, 127
    %v426 = vpop.permute.xlu0 %425
    %v433 = vadd.f32 %v390, %v416
    %v434 = vadd.f32 %v391, %v418
    %v435 = vadd.f32 %v392, %v420
    %v436 = vadd.f32 %v393, %v422
    %v437 = vadd.f32 %v394, %v424
    %v438 = vadd.f32 %v395, %v426
    %s439 = scalar_lea.vmem %s1, 64
    %v440 = vld [vmem:[%s439] sm:$0xff]
    %442 = vset.pattern.permute.xlu0 0
    %443 = vperm.xlu0 %442, %v440
    %v444 = vpop.permute.xlu0 %443
    %v446 = vmul.f32 %v82, %v444
    %v447 = vmul.f32 %v86, %v444
    %v448 = vmul.f32 %v90, %v444
    %v449 = vmul.f32 %v94, %v444
    %v450 = vmul.f32 %v98, %v444
    %v451 = vmul.f32 %v102, %v444
    %458 = vrot.lane.b32.xlu0 %v446, 126
    %v459 = vpop.permute.xlu0 %458
    %460 = vrot.lane.b32.xlu0 %v447, 126
    %v461 = vpop.permute.xlu0 %460
    %462 = vrot.lane.b32.xlu0 %v448, 126
    %v463 = vpop.permute.xlu0 %462
    %464 = vrot.lane.b32.xlu0 %v449, 126
    %v465 = vpop.permute.xlu0 %464
    %466 = vrot.lane.b32.xlu0 %v450, 126
    %v467 = vpop.permute.xlu0 %466
    %468 = vrot.lane.b32.xlu0 %v451, 126
    %v469 = vpop.permute.xlu0 %468
    %v476 = vadd.f32 %v433, %v459
    %v477 = vadd.f32 %v434, %v461
    %v478 = vadd.f32 %v435, %v463
    %v479 = vadd.f32 %v436, %v465
    %v480 = vadd.f32 %v437, %v467
    %v481 = vadd.f32 %v438, %v469
    %s482 = scalar_lea.vmem %s1, 72
    %v483 = vld [vmem:[%s482] sm:$0xff]
    %485 = vset.pattern.permute.xlu0 0
    %486 = vperm.xlu0 %485, %v483
    %v487 = vpop.permute.xlu0 %486
    %v489 = vmul.f32 %v131, %v487
    %v490 = vmul.f32 %v135, %v487
    %v491 = vmul.f32 %v139, %v487
    %v492 = vmul.f32 %v143, %v487
    %v493 = vmul.f32 %v147, %v487
    %v494 = vmul.f32 %v151, %v487
    %501 = vrot.lane.b32.xlu0 %v489, 126
    %v502 = vpop.permute.xlu0 %501
    %503 = vrot.lane.b32.xlu0 %v490, 126
    %v504 = vpop.permute.xlu0 %503
    %505 = vrot.lane.b32.xlu0 %v491, 126
    %v506 = vpop.permute.xlu0 %505
    %507 = vrot.lane.b32.xlu0 %v492, 126
    %v508 = vpop.permute.xlu0 %507
    %509 = vrot.lane.b32.xlu0 %v493, 126
    %v510 = vpop.permute.xlu0 %509
    %511 = vrot.lane.b32.xlu0 %v494, 126
    %v512 = vpop.permute.xlu0 %511
    %v519 = vadd.f32 %v476, %v502
    %v520 = vadd.f32 %v477, %v504
    %v521 = vadd.f32 %v478, %v506
    %v522 = vadd.f32 %v479, %v508
    %v523 = vadd.f32 %v480, %v510
    %v524 = vadd.f32 %v481, %v512
    %s525 = scalar_lea.vmem %s1, 80
    %v526 = vld [vmem:[%s525] sm:$0xff]
    %528 = vset.pattern.permute.xlu0 0
    %529 = vperm.xlu0 %528, %v526
    %v530 = vpop.permute.xlu0 %529
    %v532 = vmul.f32 %v180, %v530
    %v533 = vmul.f32 %v184, %v530
    %v534 = vmul.f32 %v188, %v530
    %v535 = vmul.f32 %v192, %v530
    %v536 = vmul.f32 %v196, %v530
    %v537 = vmul.f32 %v200, %v530
    %544 = vrot.lane.b32.xlu0 %v532, 126
    %v545 = vpop.permute.xlu0 %544
    %546 = vrot.lane.b32.xlu0 %v533, 126
    %v547 = vpop.permute.xlu0 %546
    %548 = vrot.lane.b32.xlu0 %v534, 126
    %v549 = vpop.permute.xlu0 %548
    %550 = vrot.lane.b32.xlu0 %v535, 126
    %v551 = vpop.permute.xlu0 %550
    %552 = vrot.lane.b32.xlu0 %v536, 126
    %v553 = vpop.permute.xlu0 %552
    %554 = vrot.lane.b32.xlu0 %v537, 126
    %v555 = vpop.permute.xlu0 %554
    %v562 = vadd.f32 %v519, %v545
    %v563 = vadd.f32 %v520, %v547
    %v564 = vadd.f32 %v521, %v549
    %v565 = vadd.f32 %v522, %v551
    %v566 = vadd.f32 %v523, %v553
    %v567 = vadd.f32 %v524, %v555
    %s568 = scalar_lea.vmem %s1, 88
    %v569 = vld [vmem:[%s568] sm:$0xff]
    %571 = vset.pattern.permute.xlu0 0
    %572 = vperm.xlu0 %571, %v569
    %v573 = vpop.permute.xlu0 %572
    %v575 = vmul.f32 %v229, %v573
    %v576 = vmul.f32 %v233, %v573
    %v577 = vmul.f32 %v237, %v573
    %v578 = vmul.f32 %v241, %v573
    %v579 = vmul.f32 %v245, %v573
    %v580 = vmul.f32 %v249, %v573
    %587 = vrot.lane.b32.xlu0 %v575, 126
    %v588 = vpop.permute.xlu0 %587
    %589 = vrot.lane.b32.xlu0 %v576, 126
    %v590 = vpop.permute.xlu0 %589
    %591 = vrot.lane.b32.xlu0 %v577, 126
    %v592 = vpop.permute.xlu0 %591
    %593 = vrot.lane.b32.xlu0 %v578, 126
    %v594 = vpop.permute.xlu0 %593
    %595 = vrot.lane.b32.xlu0 %v579, 126
    %v596 = vpop.permute.xlu0 %595
    %597 = vrot.lane.b32.xlu0 %v580, 126
    %v598 = vpop.permute.xlu0 %597
    %v605 = vadd.f32 %v562, %v588
    %v606 = vadd.f32 %v563, %v590
    %v607 = vadd.f32 %v564, %v592
    %v608 = vadd.f32 %v565, %v594
    %v609 = vadd.f32 %v566, %v596
    %v610 = vadd.f32 %v567, %v598
    %vm611 = vcmask 130048
    %612 = vst.msk [vmem:[#allocation3] sm:$0xff] %vm611, %v605
    %613 = vst.msk [vmem:[#allocation3 + $0x8] sm:$0xff] %vm611, %v606
    %614 = vst.msk [vmem:[#allocation3 + $0x10] sm:$0xff] %vm611, %v607
    %615 = vst.msk [vmem:[#allocation3 + $0x18] sm:$0xff] %vm611, %v608
    %616 = vst.msk [vmem:[#allocation3 + $0x20] sm:$0xff] %vm611, %v609
    %617 = vst.msk [vmem:[#allocation3 + $0x28] sm:$0xff] %vm611, %v610
    // Predicated region
    $region14: #{custom_conv1d.1} parent=1 // pred_check
      _
    $region15: #{custom_conv1d.1} parent=1 // pred_check_branch
      %619 = sbr.rel (0) target = $region17
    $region16: #{custom_conv1d.1} parent=1 // pred_region
      %s621 = ssub.s32 768, 768
      %622 = vsyncadd [#allocation4], %s621
      %s623 = sshll.u32 [#allocation3], 4
      %s624 = int_to_ptr.vmem [resolvable:$true] %s623
      %629 = dma.vmem_to_hbm [thread:$0]  %s624, 768, %s3, [#allocation4], 128, 128, 8
    $region17: #{custom_conv1d.1} parent=1 // pred_fallthru
      _
    // Predicated region
    $region18: #{custom_conv1d.1} parent=1 // pred_check
      _
    $region19: #{custom_conv1d.1} parent=1 // pred_check_branch
      %631 = sbr.rel (0) target = $region21
    $region20: #{custom_conv1d.1} parent=1 // pred_region
      %632 = dma.done [#allocation4], 768
    $region21: #{custom_conv1d.1} parent=1 // pred_fallthru
      _
    %633 = vsyncpa [#allocation4], 1

</llo_original>
